<compile_context>
chip_gen: v7x
topology: tpu7x:2x2x1
jax: 0.10.0
libtpu: 0.0.40
codegen_flags: <defaults>
</compile_context>

<pallas_src>
import functools

import jax
import jax.numpy as jnp
from jax import lax
from jax.experimental import pallas as pl
from jax.experimental.pallas import tpu as pltpu

BN_EPS = 1e-5

_VMEM_LIMIT = 40 * 1024 * 1024    # > 32 MiB default, < v7x 64 MiB physical
_TILE_BUDGET = 10 * 1024 * 1024   # double-buffered per-tile working set budget
_MAX_TM = 16384                   # review: 4096-16384 sweet spot for small K
_FUSED_BUDGET = 24 * 1024 * 1024  # everything-resident single-pass threshold


def _round_up(x, m):
    return (x + m - 1) // m * m


# ----------------------------- kernels --------------------------------------

def _cut_fused_kernel(w_ref, x_ref, gamma_ref, beta_ref, o_ref):
    """Single pass, X resident in VMEM: stats -> BN fold -> apply, per image."""
    n, _, s = x_ref.shape
    c_out = w_ref.shape[0]
    inv_m = 1.0 / float(n * s)
    w = w_ref[...]

    s1 = jnp.zeros((c_out, 1), jnp.float32)
    s2 = jnp.zeros((c_out, 1), jnp.float32)
    for i in range(n):  # static unroll; n is small on this path
        y = jnp.dot(w, x_ref[i], preferred_element_type=jnp.float32)
        s1 = s1 + jnp.sum(y, axis=1, keepdims=True)
        s2 = s2 + jnp.sum(y * y, axis=1, keepdims=True)

    mean = s1 * inv_m
    var = jnp.maximum(s2 * inv_m - mean * mean, 0.0)     # biased batch variance
    scale = gamma_ref[...] * lax.rsqrt(var + BN_EPS)     # rsqrt -> EUP, free slot
    shift = beta_ref[...] - mean * scale

    for i in range(n):  # recompute y (cheap, VMEM-resident) instead of keeping N copies
        y = jnp.dot(w, x_ref[i], preferred_element_type=jnp.float32)
        o_ref[i] = (y * scale + shift).astype(o_ref.dtype)


def _cut_stats_kernel(w_ref, x_ref, s1_ref, s2_ref):
    """Pass 1 (tiled path): per-channel sum(y), sum(y^2); per-core partials."""
    @pl.when(pl.program_id(1) == 0)
    def _():
        s1_ref[...] = jnp.zeros_like(s1_ref)
        s2_ref[...] = jnp.zeros_like(s2_ref)

    y = jnp.dot(w_ref[...], x_ref[...], preferred_element_type=jnp.float32)
    s1_ref[0] += jnp.sum(y, axis=1, keepdims=True)
    s2_ref[0] += jnp.sum(y * y, axis=1, keepdims=True)


def _cut_apply_kernel(w_ref, x_ref, scale_ref, shift_ref, o_ref):
    """Pass 2 (tiled path): y = W @ x_tile, out = y*scale + shift (one FMA)."""
    y = jnp.dot(w_ref[...], x_ref[...], preferred_element_type=jnp.float32)
    o_ref[...] = (y * scale_ref[...] + shift_ref[...]).astype(o_ref.dtype)


# ----------------------------- wrapper ---------------------------------------

@functools.partial(jax.jit, static_argnames=("force_two_pass", "out_dtype"))
def cut_forward(x_nchw, conv_w, conv_b, bn_gamma, bn_beta, *,
                force_two_pass=False, out_dtype=jnp.float32):
    """x_nchw: (N, Cin, H, W) f32. conv_w: (Cout, 4*Cin, 1, 1).
    Returns (N, Cout, H/2, W/2) in out_dtype (training-mode BatchNorm)."""
    del conv_b  # exactly cancelled by training-mode BN mean subtraction
    n, c_in, h, w = x_nchw.shape
    c_out = conv_w.shape[0]
    hh, ww = h // 2, w // 2
    s = hh * ww
    k = 4 * c_in
    m = n * s
    out_size = jnp.dtype(out_dtype).itemsize

    # bf16 cast FIRST -> XLA fuses convert + space-to-depth transpose in 1 pass.
    x6 = x_nchw.astype(jnp.bfloat16).reshape(n, c_in, hh, 2, ww, 2)  # (n,c,i,hp,j,wp)

    # Torch's cat([x0,x1,x2,x3]) channel order is (wp*2+hp)*Cin + c; permute the
    # tiny weight so kernels consume our (hp*2+wp)*Cin + c layout.
    w4 = conv_w.reshape(c_out, 2, 2, c_in)                 # (Cout, wp, hp, c)
    w_mat = jnp.transpose(w4, (0, 2, 1, 3)).reshape(c_out, k).astype(jnp.bfloat16)

    gamma_col = bn_gamma.astype(jnp.float32).reshape(c_out, 1)
    beta_col = bn_beta.astype(jnp.float32).reshape(c_out, 1)

    x_bytes = k * m * 2
    w_bytes = c_out * k * 2
    out_bytes = c_out * m * out_size

    fused_fits = (2 * x_bytes + 2 * out_bytes + 4 * c_out * s * 4 + w_bytes
                  <= _FUSED_BUDGET) and n <= 32

    # ---------------- fused X-resident single-pass path ----------------------
    if fused_fits and not force_two_pass:
        xt_f = jnp.transpose(x6, (0, 3, 5, 1, 2, 4)).reshape(n, k, s)  # (N, K, S)
        out3 = pl.pallas_call(
            _cut_fused_kernel,
            out_shape=jax.ShapeDtypeStruct((n, c_out, s), out_dtype),
            grid=(1,),
            in_specs=[
                pl.BlockSpec((c_out, k), lambda i: (0, 0)),
                pl.BlockSpec((n, k, s), lambda i: (0, 0, 0)),
                pl.BlockSpec((c_out, 1), lambda i: (0, 0)),
                pl.BlockSpec((c_out, 1), lambda i: (0, 0)),
            ],
            out_specs=pl.BlockSpec((n, c_out, s), lambda i: (0, 0, 0)),
            compiler_params=pltpu.CompilerParams(
                dimension_semantics=("arbitrary",),
                vmem_limit_bytes=_VMEM_LIMIT,
            ),
        )(w_mat, xt_f, gamma_col, beta_col)
        return out3.reshape(n, c_out, hh, ww)

    # ---------------- tiled two-pass path (large activations) ----------------
    # X^T layout: K on sublanes, M = N*hh*ww on lanes (lane-dense even for tiny Cout).
    xt2 = jnp.transpose(x6, (3, 5, 1, 0, 2, 4)).reshape(k, m)  # (K, M)

    # Tile size: largest 128-multiple whose double-buffered working set fits.
    per_lane = 2 * (k * 2) + 2 * (c_out * out_size)
    tm = max(128, min(_MAX_TM, (_TILE_BUDGET // per_lane) // 128 * 128))
    tm = min(tm, _round_up(-(-m // 2), 128))      # don't tile past ~m/2
    m_pad = _round_up(m, 2 * tm)                  # 2x: stats pass core split
    half = m_pad // (2 * tm)

    if m_pad != m:
        xt2 = jnp.pad(xt2, ((0, 0), (0, m_pad - m)))  # zero cols: sums unaffected

    # Pass 1: per-channel sum / sum-of-squares, split over 2 cores on v7x.
    s1, s2 = pl.pallas_call(
        _cut_stats_kernel,
        out_shape=(jax.ShapeDtypeStruct((2, c_out, 1), jnp.float32),
                   jax.ShapeDtypeStruct((2, c_out, 1), jnp.float32)),
        grid_spec=pltpu.PrefetchScalarGridSpec(
            num_scalar_prefetch=0,
            grid=(2, half),
            in_specs=[
                pl.BlockSpec((c_out, k), lambda c, i: (0, 0)),
                pl.BlockSpec((k, tm), lambda c, i: (0, c * half + i)),
            ],
            out_specs=(
                pl.BlockSpec((1, c_out, 1), lambda c, i: (c, 0, 0)),
                pl.BlockSpec((1, c_out, 1), lambda c, i: (c, 0, 0)),
            ),
        ),
        compiler_params=pltpu.CompilerParams(
            dimension_semantics=("parallel", "arbitrary"),
            vmem_limit_bytes=_VMEM_LIMIT,
        ),
        cost_estimate=pl.CostEstimate(
            flops=2 * m_pad * k * c_out, transcendentals=0,
            bytes_accessed=k * m_pad * 2 + w_bytes + 4 * c_out * 4),
    )(w_mat, xt2)

    # Tiny per-channel BN fold in plain JAX (f32).
    inv_m = 1.0 / float(m)
    mean = jnp.sum(s1, axis=0)[:, 0] * inv_m
    # TODO(synk): E[y^2]-E[y]^2 loses precision when |mean| >> std at huge M;
    # switch to per-tile shifted sums / Welford combine if that regime matters.
    var = jnp.maximum(jnp.sum(s2, axis=0)[:, 0] * inv_m - mean * mean, 0.0)
    scale = bn_gamma.astype(jnp.float32) * lax.rsqrt(var + BN_EPS)
    shift = bn_beta.astype(jnp.float32) - mean * scale

    # Pass 2: recompute y tile-by-tile, apply the fused affine, lane-dense store.
    out_t = pl.pallas_call(
        _cut_apply_kernel,
        out_shape=jax.ShapeDtypeStruct((c_out, m_pad), out_dtype),
        grid_spec=pltpu.PrefetchScalarGridSpec(
            num_scalar_prefetch=0,
            grid=(m_pad // tm,),
            in_specs=[
                pl.BlockSpec((c_out, k), lambda i: (0, 0)),
                pl.BlockSpec((k, tm), lambda i: (0, i)),
                pl.BlockSpec((c_out, 1), lambda i: (0, 0)),
                pl.BlockSpec((c_out, 1), lambda i: (0, 0)),
            ],
            out_specs=pl.BlockSpec((c_out, tm), lambda i: (0, i)),
        ),
        compiler_params=pltpu.CompilerParams(
            dimension_semantics=("parallel",),
            vmem_limit_bytes=_VMEM_LIMIT,
        ),
        cost_estimate=pl.CostEstimate(
            flops=2 * m_pad * k * c_out, transcendentals=0,
            bytes_accessed=k * m_pad * 2 + w_bytes + c_out * m_pad * out_size),
    )(w_mat, xt2, scale.reshape(c_out, 1), shift.reshape(c_out, 1))

    out = out_t[:, :m].reshape(c_out, n, hh, ww)
    return jnp.transpose(out, (1, 0, 2, 3))


# ----------------------------- test ------------------------------------------

if __name__ == "__main__":
    key = jax.random.PRNGKey(0)
    k_x, k_w, k_b, k_g, k_be = jax.random.split(key, 5)

    N, C_IN, H, W = 2, 4, 16, 16
    C_OUT = 8

    x = jax.random.normal(k_x, (N, C_IN, H, W), dtype=jnp.float32)

    fan_in = 4 * C_IN
    bound = 1.0 / (fan_in ** 0.5)
    conv_w = jax.random.uniform(k_w, (C_OUT, 4 * C_IN, 1, 1), jnp.float32, -bound, bound)
    conv_b = jax.random.uniform(k_b, (C_OUT,), jnp.float32, -bound, bound)
    bn_gamma = jnp.ones((C_OUT,), jnp.float32) + 0.1 * jax.random.normal(k_g, (C_OUT,), jnp.float32)
    bn_beta = 0.1 * jax.random.normal(k_be, (C_OUT,), jnp.float32)

    # Pure-JAX f32 reference of the torch math (bias included; BN cancels it).
    x0 = x[:, :, 0::2, 0::2]; x1 = x[:, :, 1::2, 0::2]
    x2 = x[:, :, 0::2, 1::2]; x3 = x[:, :, 1::2, 1::2]
    xc = jnp.concatenate([x0, x1, x2, x3], axis=1)
    y = jnp.einsum("nchw,oc->nohw", xc, conv_w[:, :, 0, 0]) + conv_b[None, :, None, None]
    mean = jnp.mean(y, axis=(0, 2, 3), keepdims=True)
    var = jnp.mean((y - mean) ** 2, axis=(0, 2, 3), keepdims=True)
    ref = (y - mean) * lax.rsqrt(var + BN_EPS) * bn_gamma[None, :, None, None] \
        + bn_beta[None, :, None, None]

    # Fused X-resident path (taken automatically at this size).
    out_fused = cut_forward(x, conv_w, conv_b, bn_gamma, bn_beta)
    jax.block_until_ready(out_fused)
    # Tiled two-pass path, exercised explicitly so both paths stay validated.
    out_tiled = cut_forward(x, conv_w, conv_b, bn_gamma, bn_beta, force_two_pass=True)
    jax.block_until_ready(out_tiled)

    for out in (out_fused, out_tiled):
        assert out.shape == ref.shape, (out.shape, ref.shape)
        err = float(jnp.max(jnp.abs(out - ref)))
        # bf16 activations/weights on the wire -> ~1e-2 absolute error vs f32 ref.
        assert jnp.allclose(out, ref, atol=3e-2, rtol=3e-2), err

    print("KERNEL_OK")
</pallas_src>

<mosaic_0001>
module attributes {stable_mosaic.version = 11 : i64} {
  func.func @_cut_fused_kernel(%arg0: i32, %arg1: memref<8x16xbf16, #tpu.memory_space<vmem>>, %arg2: memref<2x16x64xbf16, #tpu.memory_space<vmem>>, %arg3: memref<8x1xf32, #tpu.memory_space<vmem>>, %arg4: memref<8x1xf32, #tpu.memory_space<vmem>>, %arg5: memref<2x8x64xf32, #tpu.memory_space<vmem>>) attributes {dimension_semantics = [#tpu.dimension_semantics<arbitrary>], iteration_bounds = array<i64: 1>, scalar_prefetch = 0 : i64, scratch_operands = 0 : i64, tpu.core_type = #tpu.core_type<tc>, window_params = [{pipeline_mode = #tpu.pipeline_mode<synchronous>, transform_indices = @transform_0, window_bounds = array<i64: 8, 16>}, {pipeline_mode = #tpu.pipeline_mode<synchronous>, transform_indices = @transform_1, window_bounds = array<i64: 2, 16, 64>}, {pipeline_mode = #tpu.pipeline_mode<synchronous>, transform_indices = @transform_2, window_bounds = array<i64: 8, 1>}, {pipeline_mode = #tpu.pipeline_mode<synchronous>, transform_indices = @transform_3, window_bounds = array<i64: 8, 1>}, {pipeline_mode = #tpu.pipeline_mode<synchronous>, transform_indices = @transform_4, window_bounds = array<i64: 2, 8, 64>}]} {
    %c0 = arith.constant 0 : index
    %c0_0 = arith.constant 0 : index
    %0 = vector.load %arg1[%c0, %c0_0] : memref<8x16xbf16, #tpu.memory_space<vmem>>, vector<8x16xbf16>
    %cst = arith.constant 0.000000e+00 : f32
    %1 = vector.broadcast %cst : f32 to vector<8x1xf32>
    %cst_1 = arith.constant 0.000000e+00 : f32
    %2 = vector.broadcast %cst_1 : f32 to vector<8x1xf32>
    %c0_2 = arith.constant 0 : index
    %c0_3 = arith.constant 0 : index
    %c0_4 = arith.constant 0 : index
    %3 = vector.load %arg2[%c0_2, %c0_3, %c0_4] : memref<2x16x64xbf16, #tpu.memory_space<vmem>>, vector<1x16x64xbf16>
    %4 = vector.shape_cast %3 : vector<1x16x64xbf16> to vector<16x64xbf16>
    %cst_5 = arith.constant dense<0.000000e+00> : vector<8x64xf32>
    %5 = tpu.matmul %0, %4, %cst_5 {dimension_numbers = #tpu.dot_dimension_numbers<[1], [0], [0], [1], [0, 0, 1, 1], [], []>} : vector<8x16xbf16>, vector<16x64xbf16>, vector<8x64xf32> -> vector<8x64xf32>
    %cst_6 = arith.constant dense<0.000000e+00> : vector<8xf32>
    %6 = vector.multi_reduction <add>, %5, %cst_6 [1] : vector<8x64xf32> to vector<8xf32>
    %7 = vector.shape_cast %6 : vector<8xf32> to vector<8x1xf32>
    %8 = arith.addf %1, %7 : vector<8x1xf32>
    %9 = arith.mulf %5, %5 : vector<8x64xf32>
    %cst_7 = arith.constant dense<0.000000e+00> : vector<8xf32>
    %10 = vector.multi_reduction <add>, %9, %cst_7 [1] : vector<8x64xf32> to vector<8xf32>
    %11 = vector.shape_cast %10 : vector<8xf32> to vector<8x1xf32>
    %12 = arith.addf %2, %11 : vector<8x1xf32>
    %c1 = arith.constant 1 : index
    %c0_8 = arith.constant 0 : index
    %c0_9 = arith.constant 0 : index
    %13 = vector.load %arg2[%c1, %c0_8, %c0_9] : memref<2x16x64xbf16, #tpu.memory_space<vmem>>, vector<1x16x64xbf16>
    %14 = vector.shape_cast %13 : vector<1x16x64xbf16> to vector<16x64xbf16>
    %cst_10 = arith.constant dense<0.000000e+00> : vector<8x64xf32>
    %15 = tpu.matmul %0, %14, %cst_10 {dimension_numbers = #tpu.dot_dimension_numbers<[1], [0], [0], [1], [0, 0, 1, 1], [], []>} : vector<8x16xbf16>, vector<16x64xbf16>, vector<8x64xf32> -> vector<8x64xf32>
    %cst_11 = arith.constant dense<0.000000e+00> : vector<8xf32>
    %16 = vector.multi_reduction <add>, %15, %cst_11 [1] : vector<8x64xf32> to vector<8xf32>
    %17 = vector.shape_cast %16 : vector<8xf32> to vector<8x1xf32>
    %18 = arith.addf %8, %17 : vector<8x1xf32>
    %19 = arith.mulf %15, %15 : vector<8x64xf32>
    %cst_12 = arith.constant dense<0.000000e+00> : vector<8xf32>
    %20 = vector.multi_reduction <add>, %19, %cst_12 [1] : vector<8x64xf32> to vector<8xf32>
    %21 = vector.shape_cast %20 : vector<8xf32> to vector<8x1xf32>
    %22 = arith.addf %12, %21 : vector<8x1xf32>
    %cst_13 = arith.constant 7.812500e-03 : f32
    %23 = vector.broadcast %cst_13 : f32 to vector<8x1xf32>
    %24 = arith.mulf %18, %23 : vector<8x1xf32>
    %cst_14 = arith.constant 7.812500e-03 : f32
    %25 = vector.broadcast %cst_14 : f32 to vector<8x1xf32>
    %26 = arith.mulf %22, %25 : vector<8x1xf32>
    %27 = arith.mulf %24, %24 : vector<8x1xf32>
    %28 = arith.subf %26, %27 : vector<8x1xf32>
    %cst_15 = arith.constant 0.000000e+00 : f32
    %29 = vector.broadcast %cst_15 : f32 to vector<8x1xf32>
    %30 = arith.maximumf %28, %29 : vector<8x1xf32>
    %c0_16 = arith.constant 0 : index
    %c0_17 = arith.constant 0 : index
    %31 = vector.load %arg3[%c0_16, %c0_17] : memref<8x1xf32, #tpu.memory_space<vmem>>, vector<8x1xf32>
    %cst_18 = arith.constant 9.99999974E-6 : f32
    %32 = vector.broadcast %cst_18 : f32 to vector<8x1xf32>
    %33 = arith.addf %30, %32 : vector<8x1xf32>
    %34 = math.rsqrt %33 : vector<8x1xf32>
    %35 = arith.mulf %31, %34 : vector<8x1xf32>
    %c0_19 = arith.constant 0 : index
    %c0_20 = arith.constant 0 : index
    %36 = vector.load %arg4[%c0_19, %c0_20] : memref<8x1xf32, #tpu.memory_space<vmem>>, vector<8x1xf32>
    %37 = arith.mulf %24, %35 : vector<8x1xf32>
    %38 = arith.subf %36, %37 : vector<8x1xf32>
    %c0_21 = arith.constant 0 : index
    %c0_22 = arith.constant 0 : index
    %c0_23 = arith.constant 0 : index
    %39 = vector.load %arg2[%c0_21, %c0_22, %c0_23] : memref<2x16x64xbf16, #tpu.memory_space<vmem>>, vector<1x16x64xbf16>
    %40 = vector.shape_cast %39 : vector<1x16x64xbf16> to vector<16x64xbf16>
    %cst_24 = arith.constant dense<0.000000e+00> : vector<8x64xf32>
    %41 = tpu.matmul %0, %40, %cst_24 {dimension_numbers = #tpu.dot_dimension_numbers<[1], [0], [0], [1], [0, 0, 1, 1], [], []>} : vector<8x16xbf16>, vector<16x64xbf16>, vector<8x64xf32> -> vector<8x64xf32>
    %42 = vector.broadcast %35 : vector<8x1xf32> to vector<8x64xf32>
    %43 = arith.mulf %41, %42 : vector<8x64xf32>
    %44 = vector.broadcast %38 : vector<8x1xf32> to vector<8x64xf32>
    %45 = arith.addf %43, %44 : vector<8x64xf32>
    %c0_25 = arith.constant 0 : index
    %c0_26 = arith.constant 0 : index
    %c0_27 = arith.constant 0 : index
    %46 = vector.load %arg5[%c0_25, %c0_26, %c0_27] : memref<2x8x64xf32, #tpu.memory_space<vmem>>, vector<1x8x64xf32>
    %47 = vector.shape_cast %46 : vector<1x8x64xf32> to vector<8x64xf32>
    %48 = vector.shape_cast %45 : vector<8x64xf32> to vector<1x8x64xf32>
    tpu.vector_store %arg5[%c0_25, %c0_26, %c0_27], %48 {strides = array<i32>} : memref<2x8x64xf32, #tpu.memory_space<vmem>>, vector<1x8x64xf32>,
    %c1_28 = arith.constant 1 : index
    %c0_29 = arith.constant 0 : index
    %c0_30 = arith.constant 0 : index
    %49 = vector.load %arg2[%c1_28, %c0_29, %c0_30] : memref<2x16x64xbf16, #tpu.memory_space<vmem>>, vector<1x16x64xbf16>
    %50 = vector.shape_cast %49 : vector<1x16x64xbf16> to vector<16x64xbf16>
    %cst_31 = arith.constant dense<0.000000e+00> : vector<8x64xf32>
    %51 = tpu.matmul %0, %50, %cst_31 {dimension_numbers = #tpu.dot_dimension_numbers<[1], [0], [0], [1], [0, 0, 1, 1], [], []>} : vector<8x16xbf16>, vector<16x64xbf16>, vector<8x64xf32> -> vector<8x64xf32>
    %52 = vector.broadcast %35 : vector<8x1xf32> to vector<8x64xf32>
    %53 = arith.mulf %51, %52 : vector<8x64xf32>
    %54 = vector.broadcast %38 : vector<8x1xf32> to vector<8x64xf32>
    %55 = arith.addf %53, %54 : vector<8x64xf32>
    %c1_32 = arith.constant 1 : index
    %c0_33 = arith.constant 0 : index
    %c0_34 = arith.constant 0 : index
    %56 = vector.load %arg5[%c1_32, %c0_33, %c0_34] : memref<2x8x64xf32, #tpu.memory_space<vmem>>, vector<1x8x64xf32>
    %57 = vector.shape_cast %56 : vector<1x8x64xf32> to vector<8x64xf32>
    %58 = vector.shape_cast %55 : vector<8x64xf32> to vector<1x8x64xf32>
    tpu.vector_store %arg5[%c1_32, %c0_33, %c0_34], %58 {strides = array<i32>} : memref<2x8x64xf32, #tpu.memory_space<vmem>>, vector<1x8x64xf32>,
    return
  }
  func.func @transform_0(%arg0: i32) -> (i32, i32) {
    %c0_i32 = arith.constant 0 : i32
    %c0_i32_0 = arith.constant 0 : i32
    %c0_i32_1 = arith.constant 0 : i32
    return %c0_i32, %c0_i32_0 : i32, i32
  }
  func.func @transform_1(%arg0: i32) -> (i32, i32, i32) {
    %c0_i32 = arith.constant 0 : i32
    %c0_i32_0 = arith.constant 0 : i32
    %c0_i32_1 = arith.constant 0 : i32
    %c0_i32_2 = arith.constant 0 : i32
    return %c0_i32, %c0_i32_0, %c0_i32_1 : i32, i32, i32
  }
  func.func @transform_2(%arg0: i32) -> (i32, i32) {
    %c0_i32 = arith.constant 0 : i32
    %c0_i32_0 = arith.constant 0 : i32
    %c0_i32_1 = arith.constant 0 : i32
    return %c0_i32, %c0_i32_0 : i32, i32
  }
  func.func @transform_3(%arg0: i32) -> (i32, i32) {
    %c0_i32 = arith.constant 0 : i32
    %c0_i32_0 = arith.constant 0 : i32
    %c0_i32_1 = arith.constant 0 : i32
    return %c0_i32, %c0_i32_0 : i32, i32
  }
  func.func @transform_4(%arg0: i32) -> (i32, i32, i32) {
    %c0_i32 = arith.constant 0 : i32
    %c0_i32_0 = arith.constant 0 : i32
    %c0_i32_1 = arith.constant 0 : i32
    %c0_i32_2 = arith.constant 0 : i32
    return %c0_i32, %c0_i32_0, %c0_i32_1 : i32, i32, i32
  }
}

</mosaic_0001>

<llo_original>
// kernel: cut_forward.1
$region0: #{cut_forward.1}
  #allocation0 [shape = 'u32[]', space=smem, size = 0x4, offset = 0x4, fixed_abs, tag = 'smem constant byte address 0x4 - core index']
  #allocation1 [shape = 'u32[144,128]{1,0:T(1,128)}', space=vmem, size = 0x12000, scoped, tag = 'internal scratch']
  %s0 = inlined_call_operand.vmem [shape: bf16[8,16], index: 0, kind: input, shape index: {}]
  %s1 = inlined_call_operand.vmem [shape: bf16[2,16,64], index: 1, kind: input, shape index: {}]
  %s2 = inlined_call_operand.vmem [shape: f32[8,1], index: 2, kind: input, shape index: {}]
  %s3 = inlined_call_operand.vmem [shape: f32[8,1], index: 3, kind: input, shape index: {}]
  %s4 = inlined_call_operand.vmem [shape: f32[2,8,64], index: 4, kind: output, shape index: {}]
  %s5 = sld [smem:[#allocation0]]
  $region26: #{cut_forward.1} parent=0
    _
  %s7 = ssub.s32 1, %s5
  %s8 = scalar_select 0, %s7, %s5
  // Predicated region
  $region2: #{cut_forward.1} parent=0 // pred_check
    _
  $region3: #{cut_forward.1} parent=0 // pred_check_branch
    %10 = sbr.rel (0) target = $region5
  $region4: #{cut_forward.1} parent=0 // pred_region
    _
  $region5: #{cut_forward.1} parent=0 // pred_fallthru
    _
  // Predicated region
  $region6: #{cut_forward.1} parent=0 // pred_check
    _
  $region7: #{cut_forward.1} parent=0 // pred_check_branch
    %12 = sbr.rel (0) target = $region9
  $region8: #{cut_forward.1} parent=0 // pred_region
    _
  $region9: #{cut_forward.1} parent=0 // pred_fallthru
    _
  // Predicated region
  $region10: #{cut_forward.1} parent=0 // pred_check
    _
  $region11: #{cut_forward.1} parent=0 // pred_check_branch
    %14 = sbr.rel (0) target = $region13
  $region12: #{cut_forward.1} parent=0 // pred_region
    _
  $region13: #{cut_forward.1} parent=0 // pred_fallthru
    _
  // Predicated region
  $region14: #{cut_forward.1} parent=0 // pred_check
    _
  $region15: #{cut_forward.1} parent=0 // pred_check_branch
    %16 = sbr.rel (0) target = $region17
  $region16: #{cut_forward.1} parent=0 // pred_region
    _
  $region17: #{cut_forward.1} parent=0 // pred_fallthru
    _
  %v18 = vld [vmem:[%s0] sm:$0xf]
  %v19 = vld [vmem:[%s1] sm:$0xf]
  %v20 = vld [vmem:[%s1 + $0x4] sm:$0xf]
  %v23 = vunpack.c.l.b16 %v19
  %v24 = vunpack.c.l.b16 %v20
  %v25 = vpack.c.b16 %v24, %v23
  %vm27 = vcmask 130048
  %v29 = vsel %vm27, %v18, 0
  %31 = vmatprep.subr.bf16.mxu0 0
  %32 = vmatpush1.bf16.msra.mxu0 %v25
  %33 = vmatprep.subr.bf16.mxu0 0
  %34 = vmatpush1.bf16.msra.mxu0 0
  %35 = vmatprep.subr.bf16.mxu0 0
  %36 = vmatpush1.bf16.msra.mxu0 0
  %37 = vmatprep.subr.bf16.mxu0 0
  %38 = vmatpush1.bf16.msra.mxu0 0
  %39 = vmatprep.subr.bf16.mxu0 0
  %40 = vmatpush1.bf16.msra.mxu0 0
  %41 = vmatprep.subr.bf16.mxu0 0
  %42 = vmatpush1.bf16.msra.mxu0 0
  %43 = vmatprep.subr.bf16.mxu0 0
  %44 = vmatpush1.bf16.msra.mxu0 0
  %45 = vmatprep.subr.bf16.mxu0 0
  %46 = vmatpush1.bf16.msra.mxu0 0
  %47 = vmatprep.subr.bf16.mxu0 0
  %48 = vmatpush1.bf16.msra.mxu0 0
  %49 = vmatprep.subr.bf16.mxu0 0
  %50 = vmatpush1.bf16.msra.mxu0 0
  %51 = vmatprep.subr.bf16.mxu0 0
  %52 = vmatpush1.bf16.msra.mxu0 0
  %53 = vmatprep.subr.bf16.mxu0 0
  %54 = vmatpush1.bf16.msra.mxu0 0
  %55 = vmatprep.subr.bf16.mxu0 0
  %56 = vmatpush1.bf16.msra.mxu0 0
  %57 = vmatprep.subr.bf16.mxu0 0
  %58 = vmatpush1.bf16.msra.mxu0 0
  %59 = vmatprep.subr.bf16.mxu0 0
  %60 = vmatpush1.bf16.msra.mxu0 0
  %61 = vmatprep.subr.bf16.mxu0 0
  %62 = vmatpush1.bf16.msra.mxu0 0
  %63 = vmatprep.mubr.bf16.mxu0 0
  %64 = vmatmul.mubr.bf16.gmra.mrb[0].mxu0 %v29
  %v65 = vpop.f32.mrb[0].mxu0
  %v66 = vadd.f32 0.0, %v65
  %v67 = vpop.f32.mrb[0].mxu0
  %v68 = vpop.f32.mrb[0].mxu0
  %v69 = vpop.f32.mrb[0].mxu0
  %70 = vdwg.mxu0
  %vm71 = vcmask 523264
  %v72 = vsel %vm71, %v66, 0.0
  %73 = vadd.xlane.f32.xlu0 %v72
  %v74 = vpop.xlane.xlu0 %73
  %v75 = vadd.f32 %v74, 0.0
  %v76 = vmul.f32 %v66, %v66
  %v77 = vsel %vm71, %v76, 0.0
  %78 = vadd.xlane.f32.xlu0 %v77
  %v79 = vpop.xlane.xlu0 %78
  %v80 = vadd.f32 %v79, 0.0
  %s81 = scalar_lea.vmem %s1, 8
  %v82 = vld [vmem:[%s81] sm:$0xf]
  %v83 = vld [vmem:[%s81 + $0x4] sm:$0xf]
  %v86 = vunpack.c.l.b16 %v82
  %v87 = vunpack.c.l.b16 %v83
  %v88 = vpack.c.b16 %v87, %v86
  %90 = vmatprep.subr.bf16.mxu0 0
  %91 = vmatpush1.bf16.msra.mxu0 %v88
  %92 = vmatprep.subr.bf16.mxu0 0
  %93 = vmatpush1.bf16.msra.mxu0 0
  %94 = vmatprep.subr.bf16.mxu0 0
  %95 = vmatpush1.bf16.msra.mxu0 0
  %96 = vmatprep.subr.bf16.mxu0 0
  %97 = vmatpush1.bf16.msra.mxu0 0
  %98 = vmatprep.subr.bf16.mxu0 0
  %99 = vmatpush1.bf16.msra.mxu0 0
  %100 = vmatprep.subr.bf16.mxu0 0
  %101 = vmatpush1.bf16.msra.mxu0 0
  %102 = vmatprep.subr.bf16.mxu0 0
  %103 = vmatpush1.bf16.msra.mxu0 0
  %104 = vmatprep.subr.bf16.mxu0 0
  %105 = vmatpush1.bf16.msra.mxu0 0
  %106 = vmatprep.subr.bf16.mxu0 0
  %107 = vmatpush1.bf16.msra.mxu0 0
  %108 = vmatprep.subr.bf16.mxu0 0
  %109 = vmatpush1.bf16.msra.mxu0 0
  %110 = vmatprep.subr.bf16.mxu0 0
  %111 = vmatpush1.bf16.msra.mxu0 0
  %112 = vmatprep.subr.bf16.mxu0 0
  %113 = vmatpush1.bf16.msra.mxu0 0
  %114 = vmatprep.subr.bf16.mxu0 0
  %115 = vmatpush1.bf16.msra.mxu0 0
  %116 = vmatprep.subr.bf16.mxu0 0
  %117 = vmatpush1.bf16.msra.mxu0 0
  %118 = vmatprep.subr.bf16.mxu0 0
  %119 = vmatpush1.bf16.msra.mxu0 0
  %120 = vmatprep.subr.bf16.mxu0 0
  %121 = vmatpush1.bf16.msra.mxu0 0
  %122 = vmatprep.mubr.bf16.mxu0 0
  %123 = vmatmul.mubr.bf16.gmra.mrb[0].mxu0 %v29
  %v124 = vpop.f32.mrb[0].mxu0
  %v125 = vadd.f32 0.0, %v124
  %v126 = vpop.f32.mrb[0].mxu0
  %v127 = vpop.f32.mrb[0].mxu0
  %v128 = vpop.f32.mrb[0].mxu0
  %129 = vdwg.mxu0
  %v130 = vsel %vm71, %v125, 0.0
  %131 = vadd.xlane.f32.xlu0 %v130
  %v132 = vpop.xlane.xlu0 %131
  %v133 = vadd.f32 %v75, %v132
  %v134 = vmul.f32 %v125, %v125
  %v135 = vsel %vm71, %v134, 0.0
  %136 = vadd.xlane.f32.xlu0 %v135
  %v137 = vpop.xlane.xlu0 %136
  %v138 = vadd.f32 %v80, %v137
  %v139 = vmul.f32 %v133, 0.0078125
  %v140 = vmul.f32 %v138, 0.0078125
  %v141 = vmul.f32 %v139, %v139
  %v142 = vsub.f32 %v140, %v141
  %v143 = vmax.f32 %v142, 0.0
  %v144 = vld [vmem:[%s2] sm:$0xff]
  %v145 = vadd.f32 %v143, 1e-05
  %v146 = vrsqrt.pop %v145
  %v147 = vmul.f32 %v144, %v146
  %v148 = vld [vmem:[%s3] sm:$0xff]
  %v149 = vmul.f32 %v139, %v147
  %v150 = vsub.f32 %v148, %v149
  %152 = vset.pattern.permute.xlu0 0
  %153 = vperm.xlu0 %152, %v147
  %v154 = vpop.permute.xlu0 %153
  %v156 = vmul.f32 %v66, %v154
  %158 = vset.pattern.permute.xlu0 0
  %159 = vperm.xlu0 %158, %v150
  %v160 = vpop.permute.xlu0 %159
  %v162 = vadd.f32 %v156, %v160
  %163 = vst.msk [vmem:[%s4] sm:$0xff] %vm71, %v162
  %v164 = vld [vmem:[%s81] sm:$0xf]
  %v165 = vld [vmem:[%s81 + $0x4] sm:$0xf]
  %v168 = vunpack.c.l.b16 %v164
  %v169 = vunpack.c.l.b16 %v165
  %v170 = vpack.c.b16 %v169, %v168
  %172 = vmatprep.subr.bf16.mxu0 0
  %173 = vmatpush1.bf16.msra.mxu0 %v170
  %174 = vmatprep.subr.bf16.mxu0 0
  %175 = vmatpush1.bf16.msra.mxu0 0
  %176 = vmatprep.subr.bf16.mxu0 0
  %177 = vmatpush1.bf16.msra.mxu0 0
  %178 = vmatprep.subr.bf16.mxu0 0
  %179 = vmatpush1.bf16.msra.mxu0 0
  %180 = vmatprep.subr.bf16.mxu0 0
  %181 = vmatpush1.bf16.msra.mxu0 0
  %182 = vmatprep.subr.bf16.mxu0 0
  %183 = vmatpush1.bf16.msra.mxu0 0
  %184 = vmatprep.subr.bf16.mxu0 0
  %185 = vmatpush1.bf16.msra.mxu0 0
  %186 = vmatprep.subr.bf16.mxu0 0
  %187 = vmatpush1.bf16.msra.mxu0 0
  %188 = vmatprep.subr.bf16.mxu0 0
  %189 = vmatpush1.bf16.msra.mxu0 0
  %190 = vmatprep.subr.bf16.mxu0 0
  %191 = vmatpush1.bf16.msra.mxu0 0
  %192 = vmatprep.subr.bf16.mxu0 0
  %193 = vmatpush1.bf16.msra.mxu0 0
  %194 = vmatprep.subr.bf16.mxu0 0
  %195 = vmatpush1.bf16.msra.mxu0 0
  %196 = vmatprep.subr.bf16.mxu0 0
  %197 = vmatpush1.bf16.msra.mxu0 0
  %198 = vmatprep.subr.bf16.mxu0 0
  %199 = vmatpush1.bf16.msra.mxu0 0
  %200 = vmatprep.subr.bf16.mxu0 0
  %201 = vmatpush1.bf16.msra.mxu0 0
  %202 = vmatprep.subr.bf16.mxu0 0
  %203 = vmatpush1.bf16.msra.mxu0 0
  %204 = vmatprep.mubr.bf16.mxu0 0
  %205 = vmatmul.mubr.bf16.gmra.mrb[0].mxu0 %v29
  %v206 = vpop.f32.mrb[0].mxu0
  %v207 = vadd.f32 0.0, %v206
  %v208 = vpop.f32.mrb[0].mxu0
  %v209 = vpop.f32.mrb[0].mxu0
  %v210 = vpop.f32.mrb[0].mxu0
  %211 = vdwg.mxu0
  %v212 = vmul.f32 %v207, %v154
  %v213 = vadd.f32 %v212, %v160
  %s214 = scalar_lea.vmem %s4, 8
  %215 = vst.msk [vmem:[%s214] sm:$0xff] %vm71, %v213
  // Predicated region
  $region18: #{cut_forward.1} parent=0 // pred_check
    _
  $region19: #{cut_forward.1} parent=0 // pred_check_branch
    %217 = sbr.rel (0) target = $region21
  $region20: #{cut_forward.1} parent=0 // pred_region
    _
  $region21: #{cut_forward.1} parent=0 // pred_fallthru
    _
  // Predicated region
  $region22: #{cut_forward.1} parent=0 // pred_check
    _
  $region23: #{cut_forward.1} parent=0 // pred_check_branch
    %219 = sbr.rel (0) target = $region25
  $region24: #{cut_forward.1} parent=0 // pred_region
    _
  $region25: #{cut_forward.1} parent=0 // pred_fallthru
    _

</llo_original>
